<compile_context>
chip_gen: v5e
topology: v5e:2x2
jax: 0.10.0
libtpu: 0.0.40
codegen_flags: <defaults>
</compile_context>

<pallas_src>
import functools

import jax
import jax.numpy as jnp
from jax.experimental import pallas as pl
from jax.experimental.pallas import tpu as pltpu

_LANES = 128
_SUBLANES = 8
_FALLBACK_VMEM_BUDGET = 48 * 1024 * 1024  # safe on v7x (64 MiB physical / TC)


def _round_up(a, b):
    return (a + b - 1) // b * b


def _vmem_budget_bytes():
    """~75% of per-core VMEM capacity; fallback is v7x-safe."""
    try:
        info = pltpu.get_tpu_info()
        cap = getattr(info, "vmem_capacity_bytes", None)
        if cap:
            return int(cap) * 3 // 4
    except Exception:
        # Hardware-info query only; cannot mask kernel/compile errors.
        pass
    return _FALLBACK_VMEM_BUDGET


# ----------------------------------------------------------------------------
# Kernels
# ----------------------------------------------------------------------------
def _fused_kernel(x_ref, wx_ref, b1_ref, w2ht_ref, b2_ref, o_ref, *, nh_p):
    """Single batch-grid kernel; fc1 and fc2-shortcut share one K=n_in dot."""
    x = x_ref[...]
    # One MXU pass over K = n_in producing [fc1 | fc2_x-partial] lanes.
    hx = jnp.dot(x, wx_ref[...], preferred_element_type=jnp.float32)
    h = jnp.maximum(hx[:, :nh_p] + b1_ref[...], 0.0)          # (tb, nh_p) f32
    acc = jnp.dot(h.astype(w2ht_ref.dtype), w2ht_ref[...],
                  preferred_element_type=jnp.float32)
    o_ref[...] = (acc + hx[:, nh_p:] + b2_ref[...]).astype(o_ref.dtype)


def _split_kernel(x_ref, w1t_ref, b1_ref, w2ht_ref, w2xt_ref, b2_ref,
                  o_ref, h_ref):
    """n_out tiled along grid axis 1 (large-weight path).

    h depends only on the batch tile, so it is computed once per batch tile
    (j == 0) into VMEM scratch and reused for every n_out tile.
    """
    @pl.when(pl.program_id(1) == 0)
    def _():
        h_ref[...] = jnp.maximum(
            jnp.dot(x_ref[...], w1t_ref[...],
                    preferred_element_type=jnp.float32) + b1_ref[...], 0.0)

    acc = jnp.dot(h_ref[...].astype(w2ht_ref.dtype), w2ht_ref[...],
                  preferred_element_type=jnp.float32)
    acc = acc + jnp.dot(x_ref[...], w2xt_ref[...],
                        preferred_element_type=jnp.float32)
    o_ref[...] = (acc + b2_ref[...]).astype(o_ref.dtype)


# ----------------------------------------------------------------------------
# VMEM bookkeeping
# ----------------------------------------------------------------------------
def _weight_bytes_fused(nin_v, nh_p, no_p, w_isz):
    return (nin_v * (nh_p + no_p) + nh_p * no_p) * w_isz + (nh_p + no_p) * 4


def _weight_bytes_split(nin_v, nh_p, tn, w_isz):
    return (nin_v * nh_p + nh_p * tn + nin_v * tn) * w_isz + (nh_p + tn) * 4


def _vmem_estimate(tb, nin_p, nh_p, no_p, tn, w_isz, x_isz, out_isz, split):
    # Mosaic lane-pads every VMEM buffer's last dim to 128 lanes.
    nin_v = _round_up(nin_p, _LANES)
    if split:
        weights = _weight_bytes_split(nin_v, nh_p, tn, w_isz)
        scratch = tb * nh_p * 4
        n_tile = tn
    else:
        weights = _weight_bytes_fused(nin_v, nh_p, no_p, w_isz)
        scratch = 0
        n_tile = no_p
    weights *= 2                                   # default double-buffering
    streams = 2 * tb * nin_v * x_isz + 2 * tb * n_tile * out_isz
    interm = tb * (nh_p + no_p) * 4 + tb * n_tile * 4   # f32 dot results
    return weights + streams + interm + scratch


# ----------------------------------------------------------------------------
# Parameter preparation (hoist out of the hot path)
# ----------------------------------------------------------------------------
def prepare_fc2_shortcut_params(w1, b1, w2, b2, *, mxu_dtype=jnp.bfloat16,
                                lane_multiple=_LANES):
    """One-time weight prep: transpose, zero-pad, fuse, cast.

    w1: (n_hidden, n_in), b1: (n_hidden,)       -- torch.nn.Linear layout
    w2: (n_out, n_hidden + n_in), b2: (n_out,)
    Padding is exact (zeros); mxu_dtype=None or jnp.float32 keeps f32 inputs.
    On v6e/v7x, lane_multiple=256 fills the 256-wide MXU N dimension when the
    kernel is matmul-bound (keep 128 on v5e or when HBM-bound).
    """
    n_hidden, n_in = w1.shape
    n_out = w2.shape[0]
    assert w2.shape[1] == n_hidden + n_in, "w2 must act on cat([h, x])"

    nh_p = _round_up(n_hidden, lane_multiple)
    no_p = _round_up(n_out, lane_multiple)
    # Pad the x feature dim only when it is close to a lane multiple (gives
    # dense vld / contiguous x DMA); tiny n_in keeps its size to avoid extra
    # HBM traffic.
    nin_up = _round_up(n_in, _LANES)
    nin_p = nin_up if nin_up * 3 <= n_in * 4 else n_in

    w_dtype = jnp.float32 if mxu_dtype is None else mxu_dtype

    w1t = jnp.pad(w1.T, ((0, nin_p - n_in), (0, nh_p - n_hidden)))
    w2ht = jnp.pad(w2[:, :n_hidden].T,
                   ((0, nh_p - n_hidden), (0, no_p - n_out)))
    w2xt = jnp.pad(w2[:, n_hidden:].T,
                   ((0, nin_p - n_in), (0, no_p - n_out)))
    # Fused K=n_in RHS: [W1^T | W2_x^T], one MXU push instead of two.
    wx = jnp.concatenate([w1t, w2xt], axis=1).astype(w_dtype)
    w2ht = w2ht.astype(w_dtype)
    b1_2d = jnp.pad(b1, (0, nh_p - n_hidden)).reshape(1, nh_p).astype(jnp.float32)
    b2_2d = jnp.pad(b2, (0, no_p - n_out)).reshape(1, no_p).astype(jnp.float32)

    params = dict(wx=wx, w2ht=w2ht, b1=b1_2d, b2=b2_2d)
    meta = dict(n_in=n_in, n_hidden=n_hidden, n_out=n_out,
                nin_p=nin_p, nh_p=nh_p, no_p=no_p,
                mxu_dtype=None if mxu_dtype is None else jnp.dtype(w_dtype))
    return params, meta


# ----------------------------------------------------------------------------
# Forward pass
# ----------------------------------------------------------------------------
def fc2_layers_shortcut_apply(params, meta, x, *, block_b=1024, block_n=None,
                              vmem_budget_bytes=None):
    B, n_in = x.shape
    assert n_in == meta["n_in"]
    nin_p, nh_p, no_p = meta["nin_p"], meta["nh_p"], meta["no_p"]
    n_out = meta["n_out"]
    mxu_dtype = meta["mxu_dtype"]

    out_dtype = x.dtype
    x_dtype = out_dtype if mxu_dtype is None else mxu_dtype
    w_isz = params["wx"].dtype.itemsize
    x_isz = jnp.dtype(x_dtype).itemsize
    out_isz = jnp.dtype(out_dtype).itemsize

    budget = (vmem_budget_bytes if vmem_budget_bytes is not None
              else _vmem_budget_bytes())

    # Batch tile: big slabs amortise the ~0.35us grid-step overhead, but keep
    # >= 2 grid steps so "parallel" can shard across both v7x TensorCores.
    tb = _round_up(min(block_b, max(B, 1)), _SUBLANES)
    if B > _SUBLANES:
        tb = min(tb, _round_up(pl.cdiv(B, 2), _SUBLANES))

    # Decide whether n_out must be tiled (weight residency vs VMEM budget).
    nin_v = _round_up(nin_p, _LANES)
    split = block_n is not None
    if not split and 2 * _weight_bytes_fused(nin_v, nh_p, no_p, w_isz) > budget // 2:
        split = True
    tn = no_p
    if split:
        tn = _round_up(min(block_n or no_p, no_p), _LANES)
        while tn > _LANES and (
                2 * _weight_bytes_split(nin_v, nh_p, tn, w_isz) > budget // 2):
            tn = max(_LANES, _round_up(tn // 2, _LANES))

    # Shrink the batch tile until the working set fits the budget.
    while tb > _SUBLANES and _vmem_estimate(
            tb, nin_p, nh_p, no_p, tn, w_isz, x_isz, out_isz, split) > budget:
        tb = max(_SUBLANES, _round_up(tb // 2, _SUBLANES))

    B_p = _round_up(B, tb)
    grid_b = B_p // tb

    x_p = x
    if B_p != B or nin_p != n_in:
        x_p = jnp.pad(x, ((0, B_p - B), (0, nin_p - n_in)))
    if mxu_dtype is not None:
        x_p = x_p.astype(mxu_dtype)

    flops = 2 * B_p * (nin_p * (nh_p + no_p) + nh_p * no_p)
    bytes_accessed = (B_p * nin_p * x_isz
                      + params["wx"].size * w_isz + params["w2ht"].size * w_isz
                      + (nh_p + no_p) * 4
                      + B_p * no_p * out_isz)
    cost = pl.CostEstimate(flops=flops, transcendentals=0,
                           bytes_accessed=bytes_accessed)
    cparams = pltpu.CompilerParams(
        dimension_semantics=("parallel",) if not split else ("parallel", "arbitrary"),
        vmem_limit_bytes=int(budget),
    )

    if not split:
        grid_spec = pltpu.PrefetchScalarGridSpec(
            num_scalar_prefetch=0,
            grid=(grid_b,),
            in_specs=[
                pl.BlockSpec((tb, nin_p), lambda i: (i, 0)),          # x tile
                pl.BlockSpec((nin_p, nh_p + no_p), lambda i: (0, 0)),  # [W1^T|W2x^T]
                pl.BlockSpec((1, nh_p), lambda i: (0, 0)),             # b1
                pl.BlockSpec((nh_p, no_p), lambda i: (0, 0)),          # W2_h^T
                pl.BlockSpec((1, no_p), lambda i: (0, 0)),             # b2
            ],
            out_specs=pl.BlockSpec((tb, no_p), lambda i: (i, 0)),
        )
        out_p = pl.pallas_call(
            functools.partial(_fused_kernel, nh_p=nh_p),
            out_shape=jax.ShapeDtypeStruct((B_p, no_p), out_dtype),
            grid_spec=grid_spec,
            compiler_params=cparams,
            cost_estimate=cost,
        )(x_p, params["wx"], params["b1"], params["w2ht"], params["b2"])
        return out_p[:B, :n_out]

    # ---- n_out-tiled path (large weights; keeps tb large) -----------------
    no_pp = _round_up(no_p, tn)
    grid_n = no_pp // tn
    # For a steady-state large-model loop, pre-split/pad these once next to
    # prepare_fc2_shortcut_params instead of slicing per call.
    w1t = params["wx"][:, :nh_p]
    w2xt = params["wx"][:, nh_p:]
    w2ht = params["w2ht"]
    b2 = params["b2"]
    if no_pp != no_p:
        w2xt = jnp.pad(w2xt, ((0, 0), (0, no_pp - no_p)))
        w2ht = jnp.pad(w2ht, ((0, 0), (0, no_pp - no_p)))
        b2 = jnp.pad(b2, ((0, 0), (0, no_pp - no_p)))

    grid_spec = pltpu.PrefetchScalarGridSpec(
        num_scalar_prefetch=0,
        grid=(grid_b, grid_n),
        in_specs=[
            pl.BlockSpec((tb, nin_p), lambda i, j: (i, 0)),    # x tile
            pl.BlockSpec((nin_p, nh_p), lambda i, j: (0, 0)),  # W1^T (resident)
            pl.BlockSpec((1, nh_p), lambda i, j: (0, 0)),      # b1
            pl.BlockSpec((nh_p, tn), lambda i, j: (0, j)),     # W2_h^T tile
            pl.BlockSpec((nin_p, tn), lambda i, j: (0, j)),    # W2_x^T tile
            pl.BlockSpec((1, tn), lambda i, j: (0, j)),        # b2 tile
        ],
        out_specs=pl.BlockSpec((tb, tn), lambda i, j: (i, j)),
        scratch_shapes=[pltpu.VMEM((tb, nh_p), jnp.float32)],  # h reuse
    )
    out_p = pl.pallas_call(
        _split_kernel,
        out_shape=jax.ShapeDtypeStruct((B_p, no_pp), out_dtype),
        grid_spec=grid_spec,
        compiler_params=cparams,
        cost_estimate=cost,
    )(x_p, w1t, params["b1"], w2ht, w2xt, b2)
    return out_p[:B, :n_out]


def fc2_layers_shortcut(x, w1, b1, w2, b2, *, mxu_dtype=jnp.bfloat16,
                        block_b=1024, block_n=None, lane_multiple=_LANES):
    """Convenience wrapper (prepares weights per call; hoist for hot loops)."""
    params, meta = prepare_fc2_shortcut_params(
        w1, b1, w2, b2, mxu_dtype=mxu_dtype, lane_multiple=lane_multiple)
    return fc2_layers_shortcut_apply(params, meta, x,
                                     block_b=block_b, block_n=block_n)


# ----------------------------------------------------------------------------
# Reference + tests
# ----------------------------------------------------------------------------
def _reference(x, w1, b1, w2, b2):
    h = jnp.maximum(x @ w1.T + b1, 0.0)
    h = jnp.concatenate([h, x], axis=1)
    return h @ w2.T + b2


def _make_case(key, B, n_in, n_hidden, n_out):
    kx, k1, k2, k3, k4, key = jax.random.split(key, 6)
    x = jax.random.normal(kx, (B, n_in), dtype=jnp.float32)
    w1 = jax.random.normal(k1, (n_hidden, n_in), dtype=jnp.float32) * 0.1
    b1 = jax.random.normal(k2, (n_hidden,), dtype=jnp.float32) * 0.1
    w2 = jax.random.normal(k3, (n_out, n_hidden + n_in), dtype=jnp.float32) * 0.1
    b2 = jax.random.normal(k4, (n_out,), dtype=jnp.float32) * 0.1
    return (x, w1, b1, w2, b2), key


if __name__ == "__main__":
    key = jax.random.PRNGKey(0)

    # Case 1: module-like shapes, exact f32 MXU path (tight tolerance).
    (x, w1, b1, w2, b2), key = _make_case(key, B=16, n_in=16, n_hidden=32, n_out=8)
    out = jax.block_until_ready(
        fc2_layers_shortcut(x, w1, b1, w2, b2, mxu_dtype=jnp.float32))
    ref = _reference(x, w1, b1, w2, b2)
    assert out.shape == (16, 8)
    assert jnp.allclose(out, ref, atol=1e-5, rtol=1e-5), "mismatch (case 1, f32)"

    # Case 2: ragged batch + odd feature dims, default bf16 MXU inputs with
    # f32 accumulation (looser tolerance covers the input rounding).
    (x2, w1_2, b1_2, w2_2, b2_2), key = _make_case(key, B=10, n_in=24,
                                                   n_hidden=48, n_out=12)
    out2 = jax.block_until_ready(
        fc2_layers_shortcut(x2, w1_2, b1_2, w2_2, b2_2))   # default bf16
    ref2 = _reference(x2, w1_2, b1_2, w2_2, b2_2)
    assert out2.shape == (10, 12)
    assert jnp.allclose(out2, ref2, atol=2e-2, rtol=2e-2), "mismatch (case 2, bf16)"

    # Case 3: exercise the n_out-split (2-D grid) path + prepared-params API,
    # forced via block_n at small shapes, f32 for an exact check.
    (x3, w1_3, b1_3, w2_3, b2_3), key = _make_case(key, B=12, n_in=64,
                                                   n_hidden=96, n_out=160)
    params3, meta3 = prepare_fc2_shortcut_params(
        w1_3, b1_3, w2_3, b2_3, mxu_dtype=jnp.float32)
    out3 = jax.block_until_ready(
        fc2_layers_shortcut_apply(params3, meta3, x3, block_n=128))
    ref3 = _reference(x3, w1_3, b1_3, w2_3, b2_3)
    assert out3.shape == (12, 160)
    assert jnp.allclose(out3, ref3, atol=1e-5, rtol=1e-5), "mismatch (case 3, split)"

    print("KERNEL_OK")
</pallas_src>

<mosaic_0001>
module attributes {stable_mosaic.version = 11 : i64} {
  func.func @_fused_kernel(%arg0: i32, %arg1: memref<8x16xf32, #tpu.memory_space<vmem>>, %arg2: memref<16x256xf32, #tpu.memory_space<vmem>>, %arg3: memref<1x128xf32, #tpu.memory_space<vmem>>, %arg4: memref<128x128xf32, #tpu.memory_space<vmem>>, %arg5: memref<1x128xf32, #tpu.memory_space<vmem>>, %arg6: memref<8x128xf32, #tpu.memory_space<vmem>>) attributes {dimension_semantics = [#tpu.dimension_semantics<parallel>], iteration_bounds = array<i64: 2>, scalar_prefetch = 0 : i64, scratch_operands = 0 : i64, tpu.core_type = #tpu.core_type<tc>, window_params = [{transform_indices = @transform_0, window_bounds = array<i64: 8, 16>}, {pipeline_mode = #tpu.pipeline_mode<synchronous>, transform_indices = @transform_1, window_bounds = array<i64: 16, 256>}, {pipeline_mode = #tpu.pipeline_mode<synchronous>, transform_indices = @transform_2, window_bounds = array<i64: 1, 128>}, {pipeline_mode = #tpu.pipeline_mode<synchronous>, transform_indices = @transform_3, window_bounds = array<i64: 128, 128>}, {pipeline_mode = #tpu.pipeline_mode<synchronous>, transform_indices = @transform_4, window_bounds = array<i64: 1, 128>}, {transform_indices = @transform_5, window_bounds = array<i64: 8, 128>}]} {
    %c0 = arith.constant 0 : index
    %c0_0 = arith.constant 0 : index
    %0 = vector.load %arg1[%c0, %c0_0] : memref<8x16xf32, #tpu.memory_space<vmem>>, vector<8x16xf32>
    %c0_1 = arith.constant 0 : index
    %c0_2 = arith.constant 0 : index
    %1 = vector.load %arg2[%c0_1, %c0_2] : memref<16x256xf32, #tpu.memory_space<vmem>>, vector<16x256xf32>
    %cst = arith.constant dense<0.000000e+00> : vector<8x256xf32>
    %2 = tpu.matmul %0, %1, %cst {dimension_numbers = #tpu.dot_dimension_numbers<[1], [0], [0], [1], [0, 0, 1, 1], [], []>} : vector<8x16xf32>, vector<16x256xf32>, vector<8x256xf32> -> vector<8x256xf32>
    %3 = vector.extract_strided_slice %2 {offsets = [0, 0], sizes = [8, 128], strides = [1, 1]} : vector<8x256xf32> to vector<8x128xf32>
    %c0_3 = arith.constant 0 : index
    %c0_4 = arith.constant 0 : index
    %4 = vector.load %arg3[%c0_3, %c0_4] : memref<1x128xf32, #tpu.memory_space<vmem>>, vector<1x128xf32>
    %5 = vector.broadcast %4 : vector<1x128xf32> to vector<8x128xf32>
    %6 = arith.addf %3, %5 : vector<8x128xf32>
    %cst_5 = arith.constant 0.000000e+00 : f32
    %7 = vector.broadcast %cst_5 : f32 to vector<8x128xf32>
    %8 = arith.maximumf %6, %7 : vector<8x128xf32>
    %c0_6 = arith.constant 0 : index
    %c0_7 = arith.constant 0 : index
    %9 = vector.load %arg4[%c0_6, %c0_7] : memref<128x128xf32, #tpu.memory_space<vmem>>, vector<128x128xf32>
    %cst_8 = arith.constant dense<0.000000e+00> : vector<8x128xf32>
    %10 = tpu.matmul %8, %9, %cst_8 {dimension_numbers = #tpu.dot_dimension_numbers<[1], [0], [0], [1], [0, 0, 1, 1], [], []>} : vector<8x128xf32>, vector<128x128xf32>, vector<8x128xf32> -> vector<8x128xf32>
    %11 = vector.extract_strided_slice %2 {offsets = [0, 128], sizes = [8, 128], strides = [1, 1]} : vector<8x256xf32> to vector<8x128xf32>
    %12 = arith.addf %10, %11 : vector<8x128xf32>
    %c0_9 = arith.constant 0 : index
    %c0_10 = arith.constant 0 : index
    %13 = vector.load %arg5[%c0_9, %c0_10] : memref<1x128xf32, #tpu.memory_space<vmem>>, vector<1x128xf32>
    %14 = vector.broadcast %13 : vector<1x128xf32> to vector<8x128xf32>
    %15 = arith.addf %12, %14 : vector<8x128xf32>
    %c0_11 = arith.constant 0 : index
    %c0_12 = arith.constant 0 : index
    %16 = vector.load %arg6[%c0_11, %c0_12] : memref<8x128xf32, #tpu.memory_space<vmem>>, vector<8x128xf32>
    tpu.vector_store %arg6[%c0_11, %c0_12], %15 {strides = array<i32>} : memref<8x128xf32, #tpu.memory_space<vmem>>, vector<8x128xf32>,
    return
  }
  func.func @transform_0(%arg0: i32) -> (i32, i32) {
    %c0_i32 = arith.constant 0 : i32
    %c0_i32_0 = arith.constant 0 : i32
    return %arg0, %c0_i32 : i32, i32
  }
  func.func @transform_1(%arg0: i32) -> (i32, i32) {
    %c0_i32 = arith.constant 0 : i32
    %c0_i32_0 = arith.constant 0 : i32
    %c0_i32_1 = arith.constant 0 : i32
    return %c0_i32, %c0_i32_0 : i32, i32
  }
  func.func @transform_2(%arg0: i32) -> (i32, i32) {
    %c0_i32 = arith.constant 0 : i32
    %c0_i32_0 = arith.constant 0 : i32
    %c0_i32_1 = arith.constant 0 : i32
    return %c0_i32, %c0_i32_0 : i32, i32
  }
  func.func @transform_3(%arg0: i32) -> (i32, i32) {
    %c0_i32 = arith.constant 0 : i32
    %c0_i32_0 = arith.constant 0 : i32
    %c0_i32_1 = arith.constant 0 : i32
    return %c0_i32, %c0_i32_0 : i32, i32
  }
  func.func @transform_4(%arg0: i32) -> (i32, i32) {
    %c0_i32 = arith.constant 0 : i32
    %c0_i32_0 = arith.constant 0 : i32
    %c0_i32_1 = arith.constant 0 : i32
    return %c0_i32, %c0_i32_0 : i32, i32
  }
  func.func @transform_5(%arg0: i32) -> (i32, i32) {
    %c0_i32 = arith.constant 0 : i32
    %c0_i32_0 = arith.constant 0 : i32
    return %arg0, %c0_i32 : i32, i32
  }
}

</mosaic_0001>

<llo_original>
// kernel: tpu_custom_call.1
$region0: #{tpu_custom_call.1}
  #allocation0 [shape = 'u32[]', space=smem, size = 0x4, offset = 0x4, fixed_abs, tag = 'smem constant byte address 0x4 - core index']
  #allocation1 [shape = 'u32[72,128]{1,0:T(1,128)}', space=vmem, size = 0x9000, scoped, tag = 'internal scratch']
  %s0 = inlined_call_operand.hbm [shape: f32[16,16], index: 0, kind: input, shape index: {}]
  %s1 = inlined_call_operand.hbm [shape: f32[16,256], index: 1, kind: input, shape index: {}]
  %s2 = inlined_call_operand.vmem [shape: f32[1,128], index: 2, kind: input, shape index: {}]
  %s3 = inlined_call_operand.hbm [shape: f32[128,128], index: 3, kind: input, shape index: {}]
  %s4 = inlined_call_operand.vmem [shape: f32[1,128], index: 4, kind: input, shape index: {}]
  %s5 = inlined_call_operand.hbm [shape: f32[16,128], index: 5, kind: output, shape index: {}]
  %s6 = sld [smem:[#allocation0]]
  $region65: #{tpu_custom_call.1} parent=0
    _
  %s8 = ssub.s32 1, %s6
  %s9 = scalar_select 0, %s8, %s6
  $region1: #{tpu_custom_call.1} parent=0
    #allocation2 [shape = 'u8[8192]{0}', space=vmem, size = 0x2000, scoped, tag = 'input window, operand 0']
    #allocation3 [shape = 's32[2]{0}', space=sflag, size = 0x8, scoped, tag = 'scoped memory for tpu_custom_call.1']
    #allocation4 [shape = 's32[2]{0}', space=sflag, size = 0x8, scoped, tag = 'scoped memory for tpu_custom_call.1']
    #allocation5 [shape = 'u8[16384]{0}', space=vmem, size = 0x4000, scoped, tag = 'input window, operand 1, single buffered']
    #allocation6 [shape = 's32[1]{0}', space=sflag, size = 0x4, scoped, tag = 'scoped memory for tpu_custom_call.1']
    #allocation7 [shape = 'u8[65536]{0}', space=vmem, size = 0x10000, scoped, tag = 'input window, operand 3, single buffered']
    #allocation8 [shape = 'u8[8192]{0}', space=vmem, size = 0x2000, scoped, tag = 'output window, operand 0']
    %10 = vsyncpa [#allocation3], 0
    %s11 = scalar_lea.sflag [#allocation3], 1
    %12 = vsyncpa %s11, 0
    %13 = vsyncpa [#allocation6], 0
    %14 = vsyncpa [#allocation4], 0
    %s15 = scalar_lea.sflag [#allocation4], 1
    %16 = vsyncpa %s15, 0
    loop: start=0, step=1, limit=4
    $region2: #{tpu_custom_call.1} parent=1 // loop_pre_header
      _
    $region3: #{tpu_custom_call.1} parent=1 // loop_header
      %s18 = sphi 0, %s22
      %p19 = scmp.ge.s32.totalorder %s18, 4
      %s28 = sphi 0, %s30
      %s31 = sphi 0, %s28
      %s32 = sphi 0, %s31
      %s48 = sphi 0, %s32
      %s52 = sphi 0, %s52
      %s54 = sphi 0, %s52
      %s55 = sphi 0, %s54
      %s69 = sphi 0, %s55
      %s73 = sphi 0, %s73
      %s75 = sphi 0, %s73
      %s76 = sphi 0, %s75
      %s90 = sphi 0, %s76
      %s94 = sphi 0, %s94
      %s96 = sphi 0, %s94
      %s97 = sphi 0, %s96
      %s111 = sphi 0, %s97
      %s115 = sphi 0, %s115
      %s117 = sphi 0, %s115
      %s118 = sphi 0, %s117
      %s132 = sphi 0, %s118
      %s138 = sphi 0, %s140
      %s141 = sphi 0, %s138
      %s142 = sphi 0, %s141
      %s158 = sphi 0, %s142
    $region4: #{tpu_custom_call.1} parent=1 // loop_header_branch
      %21 = sbr.rel (%p19) target = $region8
    $region5: #{tpu_custom_call.1} parent=1 // loop_body
      %s23 = ssub.s32 %s18, 1
      %s24 = ssub.s32 %s18, 2
      %s25 = sadd.s32 %s18, 1
      %s26 = ssub.s32 %s18, %s25
      %p27 = scmp.eq.s32.totalorder %s26, 0
      %s29 = sadd.s32 %s28, 1
      %s30 = scalar_select %p27, %s28, %s29
      %p33 = pneg %p27
      %p34 = scmp.eq.s32.totalorder %s18, 1
      %p35 = por %p33, %p34
      %p36 = scmp.ne.s32.totalorder %s28, %s31
      %p37 = scmp.eq.s32.totalorder %s18, 0
      %p38 = por %p36, %p37
      %p39 = scmp.ne.s32.totalorder %s28, %s31
      %p40 = scmp.eq.s32.totalorder %s23, 1
      %p41 = por %p39, %p40
      %p42 = scmp.ne.s32.totalorder %s31, %s32
      %p43 = scmp.eq.s32.totalorder %s23, 0
      %p44 = por %p42, %p43
      %p45 = scmp.ne.s32.totalorder %s31, %s32
      %p46 = scmp.eq.s32.totalorder %s24, 1
      %p47 = por %p45, %p46
      %p49 = scmp.ne.s32.totalorder %s32, %s48
      %p50 = scmp.eq.s32.totalorder %s24, 0
      %p51 = por %p49, %p50
      %s53 = sadd.s32 %s52, 1
      %p56 = scmp.eq.s32.totalorder %s18, 1
      %p57 = scmp.ne.s32.totalorder %s52, %s54
      %p58 = scmp.eq.s32.totalorder %s18, 0
      %p59 = por %p57, %p58
      %p60 = scmp.ne.s32.totalorder %s52, %s54
      %p61 = scmp.eq.s32.totalorder %s23, 1
      %p62 = por %p60, %p61
      %p63 = scmp.ne.s32.totalorder %s54, %s55
      %p64 = scmp.eq.s32.totalorder %s23, 0
      %p65 = por %p63, %p64
      %p66 = scmp.ne.s32.totalorder %s54, %s55
      %p67 = scmp.eq.s32.totalorder %s24, 1
      %p68 = por %p66, %p67
      %p70 = scmp.ne.s32.totalorder %s55, %s69
      %p71 = scmp.eq.s32.totalorder %s24, 0
      %p72 = por %p70, %p71
      %s74 = sadd.s32 %s73, 1
      %p77 = scmp.eq.s32.totalorder %s18, 1
      %p78 = scmp.ne.s32.totalorder %s73, %s75
      %p79 = scmp.eq.s32.totalorder %s18, 0
      %p80 = por %p78, %p79
      %p81 = scmp.ne.s32.totalorder %s73, %s75
      %p82 = scmp.eq.s32.totalorder %s23, 1
      %p83 = por %p81, %p82
      %p84 = scmp.ne.s32.totalorder %s75, %s76
      %p85 = scmp.eq.s32.totalorder %s23, 0
      %p86 = por %p84, %p85
      %p87 = scmp.ne.s32.totalorder %s75, %s76
      %p88 = scmp.eq.s32.totalorder %s24, 1
      %p89 = por %p87, %p88
      %p91 = scmp.ne.s32.totalorder %s76, %s90
      %p92 = scmp.eq.s32.totalorder %s24, 0
      %p93 = por %p91, %p92
      %s95 = sadd.s32 %s94, 1
      %p98 = scmp.eq.s32.totalorder %s18, 1
      %p99 = scmp.ne.s32.totalorder %s94, %s96
      %p100 = scmp.eq.s32.totalorder %s18, 0
      %p101 = por %p99, %p100
      %p102 = scmp.ne.s32.totalorder %s94, %s96
      %p103 = scmp.eq.s32.totalorder %s23, 1
      %p104 = por %p102, %p103
      %p105 = scmp.ne.s32.totalorder %s96, %s97
      %p106 = scmp.eq.s32.totalorder %s23, 0
      %p107 = por %p105, %p106
      %p108 = scmp.ne.s32.totalorder %s96, %s97
      %p109 = scmp.eq.s32.totalorder %s24, 1
      %p110 = por %p108, %p109
      %p112 = scmp.ne.s32.totalorder %s97, %s111
      %p113 = scmp.eq.s32.totalorder %s24, 0
      %p114 = por %p112, %p113
      %s116 = sadd.s32 %s115, 1
      %p119 = scmp.eq.s32.totalorder %s18, 1
      %p120 = scmp.ne.s32.totalorder %s115, %s117
      %p121 = scmp.eq.s32.totalorder %s18, 0
      %p122 = por %p120, %p121
      %p123 = scmp.ne.s32.totalorder %s115, %s117
      %p124 = scmp.eq.s32.totalorder %s23, 1
      %p125 = por %p123, %p124
      %p126 = scmp.ne.s32.totalorder %s117, %s118
      %p127 = scmp.eq.s32.totalorder %s23, 0
      %p128 = por %p126, %p127
      %p129 = scmp.ne.s32.totalorder %s117, %s118
      %p130 = scmp.eq.s32.totalorder %s24, 1
      %p131 = por %p129, %p130
      %p133 = scmp.ne.s32.totalorder %s118, %s132
      %p134 = scmp.eq.s32.totalorder %s24, 0
      %p135 = por %p133, %p134
      %s136 = ssub.s32 %s18, %s25
      %p137 = scmp.eq.s32.totalorder %s136, 0
      %s139 = sadd.s32 %s138, 1
      %s140 = scalar_select %p137, %s138, %s139
      %p143 = pneg %p137
      %p144 = scmp.eq.s32.totalorder %s18, 1
      %p145 = por %p143, %p144
      %p146 = scmp.ne.s32.totalorder %s138, %s141
      %p147 = scmp.eq.s32.totalorder %s18, 0
      %p148 = por %p146, %p147
      %p149 = scmp.ne.s32.totalorder %s138, %s141
      %p150 = scmp.eq.s32.totalorder %s23, 1
      %p151 = por %p149, %p150
      %p152 = scmp.ne.s32.totalorder %s141, %s142
      %p153 = scmp.eq.s32.totalorder %s23, 0
      %p154 = por %p152, %p153
      %p155 = scmp.ne.s32.totalorder %s141, %s142
      %p156 = scmp.eq.s32.totalorder %s24, 1
      %p157 = por %p155, %p156
      %p159 = scmp.ne.s32.totalorder %s142, %s158
      %p160 = scmp.eq.s32.totalorder %s24, 0
      %p161 = por %p159, %p160
      %p162 = scmp.le.s32.totalorder 1, %s18
      %p163 = scmp.lt.s32.totalorder %s18, 3
      %p164 = pnand %p162, %p163
      %p165 = pneg %p164
      // Predicated region
      $region9: #{tpu_custom_call.1} parent=5 // pred_check
        _
      $region10: #{tpu_custom_call.1} parent=5 // pred_check_branch
        %167 = sbr.rel (%p164) target = $region12
      $region11: #{tpu_custom_call.1} parent=5 // pred_region
        %s168 = ssub.s32 %s18, 1
        // Predicated region
        $region13: #{tpu_custom_call.1} parent=11 // pred_check
          %p169 = pneg %p65
        $region14: #{tpu_custom_call.1} parent=11 // pred_check_branch
          %171 = sbr.rel (%p169) target = $region16
        $region15: #{tpu_custom_call.1} parent=11 // pred_region
          %173 = vsyncadd [#allocation6], 0
          %s174 = sshll.u32 %s1, 4
          %s175 = int_to_ptr.hbm [resolvable:$true] %s174
          %s176 = sshll.u32 [#allocation5], 4
          %s177 = int_to_ptr.vmem [resolvable:$true] %s176
          %182 = dma.hbm_to_vmem [thread:$0]  %s175, 512, %s177, [#allocation6], 256, 256, 16
        $region16: #{tpu_custom_call.1} parent=11 // pred_fallthru
          _
        // Predicated region
        $region17: #{tpu_custom_call.1} parent=11 // pred_check
          %p183 = pneg %p86
        $region18: #{tpu_custom_call.1} parent=11 // pred_check_branch
          %185 = sbr.rel (%p183) target = $region20
        $region19: #{tpu_custom_call.1} parent=11 // pred_region
          _
        $region20: #{tpu_custom_call.1} parent=11 // pred_fallthru
          _
        // Predicated region
        $region21: #{tpu_custom_call.1} parent=11 // pred_check
          %p186 = pneg %p107
        $region22: #{tpu_custom_call.1} parent=11 // pred_check_branch
          %188 = sbr.rel (%p186) target = $region24
        $region23: #{tpu_custom_call.1} parent=11 // pred_region
          %190 = vsyncadd [#allocation6], 0
          %s191 = sshll.u32 %s3, 4
          %s192 = int_to_ptr.hbm [resolvable:$true] %s191
          %s193 = sshll.u32 [#allocation7], 4
          %s194 = int_to_ptr.vmem [resolvable:$true] %s193
          %199 = dma.hbm_to_vmem [thread:$0]  %s192, 2048, %s194, [#allocation6], 128, 128, 8
        $region24: #{tpu_custom_call.1} parent=11 // pred_fallthru
          _
        // Predicated region
        $region25: #{tpu_custom_call.1} parent=11 // pred_check
          %p200 = pneg %p128
        $region26: #{tpu_custom_call.1} parent=11 // pred_check_branch
          %202 = sbr.rel (%p200) target = $region28
        $region27: #{tpu_custom_call.1} parent=11 // pred_region
          _
        $region28: #{tpu_custom_call.1} parent=11 // pred_fallthru
          _
      $region12: #{tpu_custom_call.1} parent=5 // pred_fallthru
        _
      %p203 = scmp.lt.s32.totalorder %s18, 2
      // Predicated region
      $region29: #{tpu_custom_call.1} parent=5 // pred_check
        %p204 = pneg %p203
      $region30: #{tpu_custom_call.1} parent=5 // pred_check_branch
        %206 = sbr.rel (%p204) target = $region32
      $region31: #{tpu_custom_call.1} parent=5 // pred_region
        // Predicated region
        $region33: #{tpu_custom_call.1} parent=31 // pred_check
          %p207 = pneg %p38
        $region34: #{tpu_custom_call.1} parent=31 // pred_check_branch
          %209 = sbr.rel (%p207) target = $region36
        $region35: #{tpu_custom_call.1} parent=31 // pred_region
          %s210 = sand.u32 %s28, 1
          %s211 = scalar_lea.sflag [#allocation3], %s210
          %s212 = sand.u32 %s28, 1
          %s213 = smul.addr %s212, 8
          %s214 = scalar_lea.vmem [#allocation2], %s213
          %216 = vsyncadd %s211, 0
          %s217 = smul.addr %s18, 8
          %s218 = scalar_lea.hbm %s0, %s217
          %s220 = sshll.u32 %s218, 4
          %s221 = int_to_ptr.hbm [resolvable:$true] %s220
          %s222 = sshll.u32 %s214, 4
          %s223 = int_to_ptr.vmem [resolvable:$true] %s222
          %225 = dma.hbm_to_vmem [thread:$0]  %s221, 128, %s223, %s211
        $region36: #{tpu_custom_call.1} parent=31 // pred_fallthru
          _
      $region32: #{tpu_custom_call.1} parent=5 // pred_fallthru
        _
      %p226 = scmp.le.s32.totalorder 1, %s18
      %p227 = scmp.lt.s32.totalorder %s18, 3
      %p228 = pnand %p226, %p227
      %p229 = pneg %p228
      // Predicated region
      $region37: #{tpu_custom_call.1} parent=5 // pred_check
        _
      $region38: #{tpu_custom_call.1} parent=5 // pred_check_branch
        %231 = sbr.rel (%p228) target = $region40
      $region39: #{tpu_custom_call.1} parent=5 // pred_region
        %s232 = ssub.s32 %s18, 1
        %s233 = sand.u32 %s31, 1
        %s234 = scalar_lea.sflag [#allocation3], %s233
        %s235 = sand.u32 %s31, 1
        %s236 = smul.addr %s235, 8
        %s237 = scalar_lea.vmem [#allocation2], %s236
        // Predicated region
        $region41: #{tpu_custom_call.1} parent=39 // pred_check
          %p238 = pneg %p44
        $region42: #{tpu_custom_call.1} parent=39 // pred_check_branch
          %240 = sbr.rel (%p238) target = $region44
        $region43: #{tpu_custom_call.1} parent=39 // pred_region
          %242 = dma.done %s234, 128
        $region44: #{tpu_custom_call.1} parent=39 // pred_fallthru
          _
        // Predicated region
        $region45: #{tpu_custom_call.1} parent=39 // pred_check
          %p243 = pneg %p65
        $region46: #{tpu_custom_call.1} parent=39 // pred_check_branch
          %245 = sbr.rel (%p243) target = $region48
        $region47: #{tpu_custom_call.1} parent=39 // pred_region
          %247 = dma.done [#allocation6], 512
        $region48: #{tpu_custom_call.1} parent=39 // pred_fallthru
          _
        // Predicated region
        $region49: #{tpu_custom_call.1} parent=39 // pred_check
          %p248 = pneg %p107
        $region50: #{tpu_custom_call.1} parent=39 // pred_check_branch
          %250 = sbr.rel (%p248) target = $region52
        $region51: #{tpu_custom_call.1} parent=39 // pred_region
          %252 = dma.done [#allocation6], 2048
        $region52: #{tpu_custom_call.1} parent=39 // pred_fallthru
          _
        %s253 = sand.u32 %s31, 1
        %s254 = scalar_lea.sflag [#allocation3], %s253
        %s255 = sand.u32 %s31, 1
        %s256 = smul.addr %s255, 8
        %s257 = scalar_lea.vmem [#allocation2], %s256
        %p258 = pneg %p44
        %p259 = pneg %p41
        %p260 = pneg %p65
        %p261 = pneg %p62
        %p262 = pneg %p86
        %p263 = pneg %p83
        %p264 = pneg %p107
        %p265 = pneg %p104
        %p266 = pneg %p128
        %p267 = pneg %p125
        %p268 = pneg %p154
        %p269 = pneg %p151
        %s270 = sand.u32 %s141, 1
        %s271 = scalar_lea.sflag [#allocation4], %s270
        %s272 = sand.u32 %s141, 1
        %s273 = smul.addr %s272, 8
        %s274 = scalar_lea.vmem [#allocation8], %s273
        %v275 = vld [vmem:[%s237] sm:$0xff]
        %v276 = vld [vmem:[#allocation5] sm:$0xff]
        %v277 = vld [vmem:[#allocation5 + $0x8] sm:$0xff]
        %v278 = vld [vmem:[#allocation5 + $0x10] sm:$0xff]
        %v279 = vld [vmem:[#allocation5 + $0x18] sm:$0xff]
        %vm280 = vcmask 130048
        %v282 = vsel %vm280, %v275, 0
        %284 = vmatpush.msra.mxu0 0.0
        %285 = vmatpush.msra.mxu0 0.0
        %286 = vmatpush.msra.mxu0 0.0
        %287 = vmatpush.msra.mxu0 0.0
        %288 = vmatpush.msra.mxu0 0.0
        %289 = vmatpush.msra.mxu0 0.0
        %290 = vmatpush.msra.mxu0 0.0
        %291 = vmatpush.msra.mxu0 0.0
        %292 = vmatpush.msra.mxu0 0.0
        %293 = vmatpush.msra.mxu0 0.0
        %294 = vmatpush.msra.mxu0 0.0
        %295 = vmatpush.msra.mxu0 0.0
        %296 = vmatpush.msra.mxu0 0.0
        %297 = vmatpush.msra.mxu0 0.0
        %298 = vmatpush.msra.mxu0 %v278
        %299 = vmatpush.msra.mxu0 %v276
        %300 = vmatmul.f32.gmra.mxu0 %v282
        %v301 = vpop.f32.mrf.mxu0
        %v302 = vadd.f32 0.0, %v301
        %303 = vdwg.mxu0
        %304 = vmatpush.msra.mxu0 0.0
        %305 = vmatpush.msra.mxu0 0.0
        %306 = vmatpush.msra.mxu0 0.0
        %307 = vmatpush.msra.mxu0 0.0
        %308 = vmatpush.msra.mxu0 0.0
        %309 = vmatpush.msra.mxu0 0.0
        %310 = vmatpush.msra.mxu0 0.0
        %311 = vmatpush.msra.mxu0 0.0
        %312 = vmatpush.msra.mxu0 0.0
        %313 = vmatpush.msra.mxu0 0.0
        %314 = vmatpush.msra.mxu0 0.0
        %315 = vmatpush.msra.mxu0 0.0
        %316 = vmatpush.msra.mxu0 0.0
        %317 = vmatpush.msra.mxu0 0.0
        %318 = vmatpush.msra.mxu0 %v279
        %319 = vmatpush.msra.mxu0 %v277
        %320 = vmatmul.f32.gmra.mxu0 %v282
        %v321 = vpop.f32.mrf.mxu0
        %v322 = vadd.f32 0.0, %v321
        %323 = vdwg.mxu0
        %v324 = vld [vmem:[%s2] sm:$0x1]
        %v326 = vperm.slane %v324, 0
        %v328 = vadd.f32 %v302, %v326
        %v329 = vmax.f32 %v328, 0.0
        %v330 = vld [vmem:[#allocation7] sm:$0xff]
        %v331 = vld [vmem:[#allocation7 + $0x8] sm:$0xff]
        %v332 = vld [vmem:[#allocation7 + $0x10] sm:$0xff]
        %v333 = vld [vmem:[#allocation7 + $0x18] sm:$0xff]
        %v334 = vld [vmem:[#allocation7 + $0x20] sm:$0xff]
        %v335 = vld [vmem:[#allocation7 + $0x28] sm:$0xff]
        %v336 = vld [vmem:[#allocation7 + $0x30] sm:$0xff]
        %v337 = vld [vmem:[#allocation7 + $0x38] sm:$0xff]
        %v338 = vld [vmem:[#allocation7 + $0x40] sm:$0xff]
        %v339 = vld [vmem:[#allocation7 + $0x48] sm:$0xff]
        %v340 = vld [vmem:[#allocation7 + $0x50] sm:$0xff]
        %v341 = vld [vmem:[#allocation7 + $0x58] sm:$0xff]
        %v342 = vld [vmem:[#allocation7 + $0x60] sm:$0xff]
        %v343 = vld [vmem:[#allocation7 + $0x68] sm:$0xff]
        %v344 = vld [vmem:[#allocation7 + $0x70] sm:$0xff]
        %v345 = vld [vmem:[#allocation7 + $0x78] sm:$0xff]
        %346 = vmatpush.msra.mxu0 %v345
        %347 = vmatpush.msra.mxu0 %v344
        %348 = vmatpush.msra.mxu0 %v343
        %349 = vmatpush.msra.mxu0 %v342
        %350 = vmatpush.msra.mxu0 %v341
        %351 = vmatpush.msra.mxu0 %v340
        %352 = vmatpush.msra.mxu0 %v339
        %353 = vmatpush.msra.mxu0 %v338
        %354 = vmatpush.msra.mxu0 %v337
        %355 = vmatpush.msra.mxu0 %v336
        %356 = vmatpush.msra.mxu0 %v335
        %357 = vmatpush.msra.mxu0 %v334
        %358 = vmatpush.msra.mxu0 %v333
        %359 = vmatpush.msra.mxu0 %v332
        %360 = vmatpush.msra.mxu0 %v331
        %361 = vmatpush.msra.mxu0 %v330
        %362 = vmatmul.f32.gmra.mxu0 %v329
        %v363 = vpop.f32.mrf.mxu0
        %v364 = vadd.f32 %v322, %v363
        %365 = vdwg.mxu0
        %v366 = vld [vmem:[%s4] sm:$0x1]
        %v368 = vperm.slane %v366, 0
        %v370 = vadd.f32 %v364, %v368
        %371 = vst [vmem:[%s274] sm:$0xff] %v370
        %s372 = sand.u32 %s141, 1
        %s373 = scalar_lea.sflag [#allocation4], %s372
        %s374 = sand.u32 %s141, 1
        %s375 = smul.addr %s374, 8
        %s376 = scalar_lea.vmem [#allocation8], %s375
        // Predicated region
        $region53: #{tpu_custom_call.1} parent=39 // pred_check
          %p377 = pneg %p151
        $region54: #{tpu_custom_call.1} parent=39 // pred_check_branch
          %379 = sbr.rel (%p377) target = $region56
        $region55: #{tpu_custom_call.1} parent=39 // pred_region
          %381 = vsyncadd %s373, 0
          %s382 = smul.addr %s23, 8
          %s383 = scalar_lea.hbm %s5, %s382
          %s385 = sshll.u32 %s376, 4
          %s386 = int_to_ptr.vmem [resolvable:$true] %s385
          %s387 = sshll.u32 %s383, 4
          %s388 = int_to_ptr.hbm [resolvable:$true] %s387
          %390 = dma.vmem_to_hbm [thread:$0]  %s386, 128, %s388, %s373
        $region56: #{tpu_custom_call.1} parent=39 // pred_fallthru
          _
      $region40: #{tpu_custom_call.1} parent=5 // pred_fallthru
        _
      %p391 = scmp.le.s32.totalorder 2, %s18
      // Predicated region
      $region57: #{tpu_custom_call.1} parent=5 // pred_check
        %p392 = pneg %p391
      $region58: #{tpu_custom_call.1} parent=5 // pred_check_branch
        %394 = sbr.rel (%p392) target = $region60
      $region59: #{tpu_custom_call.1} parent=5 // pred_region
        %s395 = ssub.s32 %s18, 2
        // Predicated region
        $region61: #{tpu_custom_call.1} parent=59 // pred_check
          %p396 = pneg %p157
        $region62: #{tpu_custom_call.1} parent=59 // pred_check_branch
          %398 = sbr.rel (%p396) target = $region64
        $region63: #{tpu_custom_call.1} parent=59 // pred_region
          %s399 = sand.u32 %s142, 1
          %s400 = scalar_lea.sflag [#allocation4], %s399
          %s401 = sand.u32 %s142, 1
          %s402 = smul.addr %s401, 8
          %s403 = scalar_lea.vmem [#allocation8], %s402
          %405 = dma.done %s400, 128
        $region64: #{tpu_custom_call.1} parent=59 // pred_fallthru
          _
      $region60: #{tpu_custom_call.1} parent=5 // pred_fallthru
        _
    $region6: #{tpu_custom_call.1} parent=1 // loop_footer
      %s22 = sadd.s32 1, %s18
    $region7: #{tpu_custom_call.1} parent=1 // loop_footer_branch
      %17 = sbr.rel target = $region3
    $region8: #{tpu_custom_call.1} parent=1 // loop_exit
      _
    %406 = vsyncpa [#allocation3], 1
    %s407 = scalar_lea.sflag [#allocation3], 1
    %408 = vsyncpa %s407, 1
    %409 = vsyncpa [#allocation6], 1
    %410 = vsyncpa [#allocation4], 1
    %s411 = scalar_lea.sflag [#allocation4], 1
    %412 = vsyncpa %s411, 1

</llo_original>
